<compile_context>
chip_gen: v7x
topology: tpu7x:2x2x1
jax: 0.10.0
libtpu: 0.0.40
codegen_flags: <defaults>
</compile_context>

<pallas_src>
import jax
import jax.numpy as jnp
from jax import lax
from jax.experimental import pallas as pl
from jax.experimental.pallas import tpu as pltpu


def _ceil_to(x, m):
    return ((x + m - 1) // m) * m


def _cdiv(a, b):
    return (a + b - 1) // b


def npairs_kernel(a_hat_ref, negatives_ref, out_ref):
    """Per tile: out[r, 0] = logsumexp_i cos(anchor[i], negatives[row r, i])."""
    eps2 = jnp.float32(1e-16)  # eps**2 with eps = 1e-8 (torch cosine_similarity clamp)

    a_hat = a_hat_ref[...]                                    # (B, D) f32, pre-normalized
    neg = negatives_ref[...].astype(jnp.float32)              # (TB, N, D), N == B

    inv_nn = lax.rsqrt(
        jnp.maximum(jnp.sum(neg * neg, axis=-1), eps2))       # (TB, N)
    neg_dot = jnp.sum(a_hat[None, :, :] * neg, axis=-1)       # (TB, N)
    neg_sim = neg_dot * inv_nn                                # (TB, N)

    m = jnp.max(neg_sim, axis=-1, keepdims=True)              # (TB, 1)
    out_ref[...] = jnp.log(
        jnp.sum(jnp.exp(neg_sim - m), axis=-1, keepdims=True)) + m


def _vmem_limit_bytes():
    """Generation-aware scoped-VMEM limit: ~96 MiB on 128 MiB parts, <=48 MiB on v7x."""
    cap = 64 * 1024 * 1024
    try:
        info = pltpu.get_tpu_info()
        cap = int(getattr(info, "vmem_capacity_bytes", cap))
    except Exception:
        pass
    if cap >= 128 * 1024 * 1024:
        return 96 * 1024 * 1024
    return min(48 * 1024 * 1024, (cap * 3) // 4)


def _pick_tile_rows(B, N, D, neg_itemsize, vmem_limit_bytes, min_steps=4):
    """Rows per negatives tile.

    Upper bounds:
      * VMEM: 2x double-buffered native negatives block + ~2 f32 block-equivalents of
        in-kernel upcast/temporaries + lane-padded output block + the resident
        (double-buffered) a_hat block + headroom must fit vmem_limit_bytes.
      * Steps: at most cdiv(B, min_steps) rows per tile so the grid has >= min_steps
        steps (megacore sharding on v7x + DMA/compute overlap on all generations).
    """
    lanes = _ceil_to(D, 128)                          # lane padding of the minor dim
    sub_n = _ceil_to(N, 8)                            # sublane padding of the middle dim
    row_native = sub_n * lanes * neg_itemsize         # one TB-row of the negatives block
    row_f32 = sub_n * lanes * 4                       # f32 upcast / temporaries
    per_row = 2 * row_native + 2 * row_f32 + 2 * 128 * 4   # dbuf block + temps + out pad
    fixed = 2 * _ceil_to(B, 8) * lanes * 4            # resident a_hat block (f32, dbuf'd)
    headroom = 4 * 1024 * 1024
    usable = vmem_limit_bytes - fixed - headroom
    cap_rows = max(8, usable // per_row)
    # TODO(synk): no N-axis tiling fallback -- if a single (8, N, D) slab already
    # exceeds the VMEM limit this still requests TB=8 and may fail to compile.

    steps_rows = max(8, _cdiv(B, min_steps))          # keep >= min_steps grid steps
    tb = min(int(cap_rows), steps_rows, _ceil_to(B, 8))
    return max(8, (tb // 8) * 8)                      # multiple of 8 (output sublane rule)


def npairs_loss(anchor, positive, negatives, *, tile_rows=None):
    B, D = anchor.shape
    Bn, N, Dn = negatives.shape
    assert positive.shape == (B, D)
    assert Bn == B and Dn == D
    # PyTorch broadcasting in the reference forward requires N == B.
    assert N == B, "NPairsLoss reference semantics require N == B"

    eps = jnp.float32(1e-8)
    a32 = anchor.astype(jnp.float32)
    p32 = positive.astype(jnp.float32)
    a_norm = jnp.maximum(jnp.sqrt(jnp.sum(a32 * a32, axis=-1, keepdims=True)), eps)
    p_norm = jnp.maximum(jnp.sqrt(jnp.sum(p32 * p32, axis=-1, keepdims=True)), eps)
    # Hoisted out of the kernel (O(B*D), negligible vs. the negatives traffic).
    pos_sim = jnp.sum(a32 * p32, axis=-1, keepdims=True) / (a_norm * p_norm)   # (B, 1)
    a_hat = a32 / a_norm                                                        # (B, D)

    vmem_limit = _vmem_limit_bytes()
    neg_itemsize = int(jnp.dtype(negatives.dtype).itemsize)
    TB = tile_rows if tile_rows is not None else _pick_tile_rows(
        B, N, D, neg_itemsize, vmem_limit)
    num_tiles = _cdiv(B, TB)
    padded_rows = num_tiles * TB

    cost = pl.CostEstimate(
        flops=4 * B * N * D + 8 * B * N,
        transcendentals=2 * B * N,
        bytes_accessed=B * N * D * neg_itemsize + B * D * 4 + padded_rows * 4,
    )

    log_prob = pl.pallas_call(
        npairs_kernel,
        out_shape=jax.ShapeDtypeStruct((padded_rows, 1), jnp.float32),
        grid_spec=pltpu.PrefetchScalarGridSpec(
            num_scalar_prefetch=0,
            grid=(num_tiles,),
            in_specs=[
                pl.BlockSpec((B, D), lambda t: (0, 0)),          # a_hat, constant block
                pl.BlockSpec((TB, N, D), lambda t: (t, 0, 0)),   # negatives, pipelined
            ],
            out_specs=pl.BlockSpec((TB, 1), lambda t: (t, 0)),   # per-row logsumexp
        ),
        compiler_params=pltpu.CompilerParams(
            dimension_semantics=("parallel",),                   # independent tiles
            vmem_limit_bytes=vmem_limit,
        ),
        cost_estimate=cost,
    )(a_hat, negatives)

    # Tail rows (B..padded_rows) of padded blocks hold unspecified values; slice first.
    return jnp.mean(log_prob[:B, 0] - pos_sim[:, 0])


def npairs_loss_ref(anchor, positive, negatives):
    """Pure-JAX reference (mirrors the PyTorch forward)."""
    eps = 1e-8
    a = anchor.astype(jnp.float32)
    p = positive.astype(jnp.float32)
    n = negatives.astype(jnp.float32)
    a_norm = jnp.maximum(jnp.linalg.norm(a, axis=-1), eps)                 # (B,)
    p_norm = jnp.maximum(jnp.linalg.norm(p, axis=-1), eps)                 # (B,)
    pos_sim = jnp.sum(a * p, axis=-1) / (a_norm * p_norm)                  # (B,)
    n_norm = jnp.maximum(jnp.linalg.norm(n, axis=-1), eps)                 # (B, N)
    neg_dot = jnp.sum(a[None, :, :] * n, axis=-1)                          # (B, N)
    neg_sim = neg_dot / (n_norm * a_norm[None, :])                         # (B, N)
    log_prob = jax.scipy.special.logsumexp(neg_sim, axis=1)                # (B,)
    return jnp.mean(-pos_sim + log_prob)


if __name__ == "__main__":
    key = jax.random.PRNGKey(0)

    # Case 1: small shapes consistent with the module (single grid step).
    B, N, D = 8, 8, 32   # N == B required by the reference forward's broadcasting
    ka, kp, kn = jax.random.split(key, 3)
    anchor = jax.random.normal(ka, (B, D), dtype=jnp.float32)
    positive = jax.random.normal(kp, (B, D), dtype=jnp.float32)
    negatives = jax.random.normal(kn, (B, N, D), dtype=jnp.float32)

    loss = jax.block_until_ready(npairs_loss(anchor, positive, negatives))
    loss_ref = jax.block_until_ready(npairs_loss_ref(anchor, positive, negatives))
    assert jnp.isfinite(loss), "kernel produced non-finite loss"
    assert jnp.allclose(loss, loss_ref, rtol=1e-3, atol=1e-3), (loss, loss_ref)

    # Case 2: slightly larger B exercises the multi-step (pipelined / megacore) path.
    B2, N2, D2 = 48, 48, 64
    ka2, kp2, kn2 = jax.random.split(jax.random.PRNGKey(1), 3)
    anchor2 = jax.random.normal(ka2, (B2, D2), dtype=jnp.float32)
    positive2 = jax.random.normal(kp2, (B2, D2), dtype=jnp.float32)
    negatives2 = jax.random.normal(kn2, (B2, N2, D2), dtype=jnp.float32)

    loss2 = jax.block_until_ready(npairs_loss(anchor2, positive2, negatives2))
    loss2_ref = jax.block_until_ready(npairs_loss_ref(anchor2, positive2, negatives2))
    assert jnp.isfinite(loss2), "kernel produced non-finite loss (multi-tile)"
    assert jnp.allclose(loss2, loss2_ref, rtol=1e-3, atol=1e-3), (loss2, loss2_ref)

    print("KERNEL_OK")
</pallas_src>

<mosaic_0001>
module attributes {stable_mosaic.version = 11 : i64} {
  func.func @npairs_kernel(%arg0: i32, %arg1: memref<8x32xf32, #tpu.memory_space<vmem>>, %arg2: memref<8x8x32xf32, #tpu.memory_space<vmem>>, %arg3: memref<8x1xf32, #tpu.memory_space<vmem>>) attributes {dimension_semantics = [#tpu.dimension_semantics<parallel>], iteration_bounds = array<i64: 1>, scalar_prefetch = 0 : i64, scratch_operands = 0 : i64, tpu.core_type = #tpu.core_type<tc>, window_params = [{pipeline_mode = #tpu.pipeline_mode<synchronous>, transform_indices = @transform_0, window_bounds = array<i64: 8, 32>}, {transform_indices = @transform_1, window_bounds = array<i64: 8, 8, 32>}, {transform_indices = @transform_2, window_bounds = array<i64: 8, 1>}]} {
    %c0 = arith.constant 0 : index
    %c0_0 = arith.constant 0 : index
    %0 = vector.load %arg1[%c0, %c0_0] : memref<8x32xf32, #tpu.memory_space<vmem>>, vector<8x32xf32>
    %c0_1 = arith.constant 0 : index
    %c0_2 = arith.constant 0 : index
    %c0_3 = arith.constant 0 : index
    %1 = vector.load %arg2[%c0_1, %c0_2, %c0_3] : memref<8x8x32xf32, #tpu.memory_space<vmem>>, vector<8x8x32xf32>
    %2 = arith.mulf %1, %1 : vector<8x8x32xf32>
    %cst = arith.constant dense<0.000000e+00> : vector<8x8xf32>
    %3 = vector.multi_reduction <add>, %2, %cst [2] : vector<8x8x32xf32> to vector<8x8xf32>
    %cst_4 = arith.constant 1.000000e-16 : f32
    %4 = vector.broadcast %cst_4 : f32 to vector<8x8xf32>
    %5 = arith.maximumf %3, %4 : vector<8x8xf32>
    %6 = math.rsqrt %5 : vector<8x8xf32>
    %7 = vector.shape_cast %0 : vector<8x32xf32> to vector<1x8x32xf32>
    %8 = vector.broadcast %7 : vector<1x8x32xf32> to vector<8x8x32xf32>
    %9 = arith.mulf %8, %1 : vector<8x8x32xf32>
    %cst_5 = arith.constant dense<0.000000e+00> : vector<8x8xf32>
    %10 = vector.multi_reduction <add>, %9, %cst_5 [2] : vector<8x8x32xf32> to vector<8x8xf32>
    %11 = arith.mulf %10, %6 : vector<8x8xf32>
    %cst_6 = arith.constant dense<0xFF800000> : vector<8xf32>
    %12 = vector.multi_reduction <maximumf>, %11, %cst_6 [1] : vector<8x8xf32> to vector<8xf32>
    %13 = vector.shape_cast %12 : vector<8xf32> to vector<8x1xf32>
    %14 = vector.broadcast %13 : vector<8x1xf32> to vector<8x8xf32>
    %15 = arith.subf %11, %14 : vector<8x8xf32>
    %16 = math.exp %15 : vector<8x8xf32>
    %cst_7 = arith.constant dense<0.000000e+00> : vector<8xf32>
    %17 = vector.multi_reduction <add>, %16, %cst_7 [1] : vector<8x8xf32> to vector<8xf32>
    %18 = vector.shape_cast %17 : vector<8xf32> to vector<8x1xf32>
    %19 = math.log %18 : vector<8x1xf32>
    %20 = arith.addf %19, %13 : vector<8x1xf32>
    %c0_8 = arith.constant 0 : index
    %c0_9 = arith.constant 0 : index
    %21 = vector.load %arg3[%c0_8, %c0_9] : memref<8x1xf32, #tpu.memory_space<vmem>>, vector<8x1xf32>
    tpu.vector_store %arg3[%c0_8, %c0_9], %20 {strides = array<i32>} : memref<8x1xf32, #tpu.memory_space<vmem>>, vector<8x1xf32>,
    return
  }
  func.func @transform_0(%arg0: i32) -> (i32, i32) {
    %c0_i32 = arith.constant 0 : i32
    %c0_i32_0 = arith.constant 0 : i32
    %c0_i32_1 = arith.constant 0 : i32
    return %c0_i32, %c0_i32_0 : i32, i32
  }
  func.func @transform_1(%arg0: i32) -> (i32, i32, i32) {
    %c0_i32 = arith.constant 0 : i32
    %c0_i32_0 = arith.constant 0 : i32
    %c0_i32_1 = arith.constant 0 : i32
    return %arg0, %c0_i32, %c0_i32_0 : i32, i32, i32
  }
  func.func @transform_2(%arg0: i32) -> (i32, i32) {
    %c0_i32 = arith.constant 0 : i32
    %c0_i32_0 = arith.constant 0 : i32
    return %arg0, %c0_i32 : i32, i32
  }
}

</mosaic_0001>

<llo_original>
// kernel: tpu_custom_call.1
$region0: #{tpu_custom_call.1}
  #allocation0 [shape = 'u32[]', space=smem, size = 0x4, offset = 0x4, fixed_abs, tag = 'smem constant byte address 0x4 - core index']
  #allocation1 [shape = 'u32[144,128]{1,0:T(1,128)}', space=vmem, size = 0x12000, scoped, tag = 'internal scratch']
  %s0 = inlined_call_operand.hbm [shape: f32[8,32], index: 0, kind: input, shape index: {}]
  %s1 = inlined_call_operand.hbm [shape: f32[8,8,32], index: 1, kind: input, shape index: {}]
  %s2 = inlined_call_operand.vmem [shape: f32[8,1], index: 2, kind: output, shape index: {}]
  %s3 = sld [smem:[#allocation0]]
  $region26: #{tpu_custom_call.1} parent=0
    _
  %s5 = ssub.s32 1, %s3
  %s6 = scalar_select 0, %s5, %s3
  $region1: #{tpu_custom_call.1} parent=0
    #allocation2 [shape = 'u8[4096]{0}', space=vmem, size = 0x1000, scoped, tag = 'input window, operand 0, single buffered']
    #allocation3 [shape = 's32[1]{0}', space=sflag, size = 0x4, scoped, tag = 'scoped memory for tpu_custom_call.1']
    #allocation4 [shape = 'u8[32768]{0}', space=vmem, size = 0x8000, scoped, tag = 'input window, operand 1, single buffered']
    #allocation5 [shape = 's32[1]{0}', space=sflag, size = 0x4, scoped, tag = 'scoped memory for tpu_custom_call.1']
    %7 = vsyncpa [#allocation3], 0
    %8 = vsyncpa [#allocation5], 0
    // Predicated region
    $region2: #{tpu_custom_call.1} parent=1 // pred_check
      _
    $region3: #{tpu_custom_call.1} parent=1 // pred_check_branch
      %10 = sbr.rel (0) target = $region5
    $region4: #{tpu_custom_call.1} parent=1 // pred_region
      %s12 = ssub.s32 128, 128
      %13 = vsyncadd [#allocation3], %s12
      %s15 = sshll.u32 [#allocation2], 4
      %s16 = int_to_ptr.vmem [resolvable:$true] %s15
      %18 = dma.hbm_to_vmem [thread:$0]  %s0, 128, %s16, [#allocation3]
    $region5: #{tpu_custom_call.1} parent=1 // pred_fallthru
      _
    // Predicated region
    $region6: #{tpu_custom_call.1} parent=1 // pred_check
      _
    $region7: #{tpu_custom_call.1} parent=1 // pred_check_branch
      %20 = sbr.rel (0) target = $region9
    $region8: #{tpu_custom_call.1} parent=1 // pred_region
      %s22 = ssub.s32 1024, 1024
      %23 = vsyncadd [#allocation5], %s22
      %s24 = sshll.u32 [#allocation4], 4
      %s25 = int_to_ptr.vmem [resolvable:$true] %s24
      %30 = dma.hbm_to_vmem [thread:$0]  %s1, 1024, %s25, [#allocation5], 128, 128, 8
    $region9: #{tpu_custom_call.1} parent=1 // pred_fallthru
      _
    // Predicated region
    $region10: #{tpu_custom_call.1} parent=1 // pred_check
      _
    $region11: #{tpu_custom_call.1} parent=1 // pred_check_branch
      %32 = sbr.rel (0) target = $region13
    $region12: #{tpu_custom_call.1} parent=1 // pred_region
      %33 = dma.done [#allocation3], 128
    $region13: #{tpu_custom_call.1} parent=1 // pred_fallthru
      _
    // Predicated region
    $region14: #{tpu_custom_call.1} parent=1 // pred_check
      _
    $region15: #{tpu_custom_call.1} parent=1 // pred_check_branch
      %35 = sbr.rel (0) target = $region17
    $region16: #{tpu_custom_call.1} parent=1 // pred_region
      %36 = dma.done [#allocation5], 1024
    $region17: #{tpu_custom_call.1} parent=1 // pred_fallthru
      _
    %v37 = vld [vmem:[#allocation2] sm:$0xff]
    %v38 = vld [vmem:[#allocation4] sm:$0xff]
    %v39 = vld [vmem:[#allocation4 + $0x8] sm:$0xff]
    %v40 = vld [vmem:[#allocation4 + $0x10] sm:$0xff]
    %v41 = vld [vmem:[#allocation4 + $0x18] sm:$0xff]
    %v42 = vld [vmem:[#allocation4 + $0x20] sm:$0xff]
    %v43 = vld [vmem:[#allocation4 + $0x28] sm:$0xff]
    %v44 = vld [vmem:[#allocation4 + $0x30] sm:$0xff]
    %v45 = vld [vmem:[#allocation4 + $0x38] sm:$0xff]
    %v46 = vmul.f32 %v38, %v38
    %v47 = vmul.f32 %v39, %v39
    %v48 = vmul.f32 %v40, %v40
    %v49 = vmul.f32 %v41, %v41
    %v50 = vmul.f32 %v42, %v42
    %v51 = vmul.f32 %v43, %v43
    %v52 = vmul.f32 %v44, %v44
    %v53 = vmul.f32 %v45, %v45
    %vm54 = vcmask 261120
    %v55 = vsel %vm54, %v46, 0.0
    %56 = vadd.xlane.f32.xlu0 %v55
    %v57 = vpop.xlane.xlu0 %56
    %v58 = vsel %vm54, %v47, 0.0
    %59 = vadd.xlane.f32.xlu0 %v58
    %v60 = vpop.xlane.xlu0 %59
    %v61 = vsel %vm54, %v48, 0.0
    %62 = vadd.xlane.f32.xlu0 %v61
    %v63 = vpop.xlane.xlu0 %62
    %v64 = vsel %vm54, %v49, 0.0
    %65 = vadd.xlane.f32.xlu0 %v64
    %v66 = vpop.xlane.xlu0 %65
    %v67 = vsel %vm54, %v50, 0.0
    %68 = vadd.xlane.f32.xlu0 %v67
    %v69 = vpop.xlane.xlu0 %68
    %v70 = vsel %vm54, %v51, 0.0
    %71 = vadd.xlane.f32.xlu0 %v70
    %v72 = vpop.xlane.xlu0 %71
    %v73 = vsel %vm54, %v52, 0.0
    %74 = vadd.xlane.f32.xlu0 %v73
    %v75 = vpop.xlane.xlu0 %74
    %v76 = vsel %vm54, %v53, 0.0
    %77 = vadd.xlane.f32.xlu0 %v76
    %v78 = vpop.xlane.xlu0 %77
    %v79 = vmax.f32 %v57, 1e-16
    %v80 = vmax.f32 %v60, 1e-16
    %v81 = vmax.f32 %v63, 1e-16
    %v82 = vmax.f32 %v66, 1e-16
    %v83 = vmax.f32 %v69, 1e-16
    %v84 = vmax.f32 %v72, 1e-16
    %v85 = vmax.f32 %v75, 1e-16
    %v86 = vmax.f32 %v78, 1e-16
    %v87 = vrsqrt.pop %v79
    %v88 = vrsqrt.pop %v80
    %v89 = vrsqrt.pop %v81
    %v90 = vrsqrt.pop %v82
    %v91 = vrsqrt.pop %v83
    %v92 = vrsqrt.pop %v84
    %v93 = vrsqrt.pop %v85
    %v94 = vrsqrt.pop %v86
    %v95 = vmul.f32 %v37, %v38
    %v96 = vmul.f32 %v37, %v39
    %v97 = vmul.f32 %v37, %v40
    %v98 = vmul.f32 %v37, %v41
    %v99 = vmul.f32 %v37, %v42
    %v100 = vmul.f32 %v37, %v43
    %v101 = vmul.f32 %v37, %v44
    %v102 = vmul.f32 %v37, %v45
    %v103 = vsel %vm54, %v95, 0.0
    %104 = vadd.xlane.f32.xlu0 %v103
    %v105 = vpop.xlane.xlu0 %104
    %v106 = vsel %vm54, %v96, 0.0
    %107 = vadd.xlane.f32.xlu0 %v106
    %v108 = vpop.xlane.xlu0 %107
    %v109 = vsel %vm54, %v97, 0.0
    %110 = vadd.xlane.f32.xlu0 %v109
    %v111 = vpop.xlane.xlu0 %110
    %v112 = vsel %vm54, %v98, 0.0
    %113 = vadd.xlane.f32.xlu0 %v112
    %v114 = vpop.xlane.xlu0 %113
    %v115 = vsel %vm54, %v99, 0.0
    %116 = vadd.xlane.f32.xlu0 %v115
    %v117 = vpop.xlane.xlu0 %116
    %v118 = vsel %vm54, %v100, 0.0
    %119 = vadd.xlane.f32.xlu0 %v118
    %v120 = vpop.xlane.xlu0 %119
    %v121 = vsel %vm54, %v101, 0.0
    %122 = vadd.xlane.f32.xlu0 %v121
    %v123 = vpop.xlane.xlu0 %122
    %v124 = vsel %vm54, %v102, 0.0
    %125 = vadd.xlane.f32.xlu0 %v124
    %v126 = vpop.xlane.xlu0 %125
    %v127 = vmul.f32 %v105, %v87
    %v128 = vmul.f32 %v108, %v88
    %v129 = vmul.f32 %v111, %v89
    %v130 = vmul.f32 %v114, %v90
    %v131 = vmul.f32 %v117, %v91
    %v132 = vmul.f32 %v120, %v92
    %v133 = vmul.f32 %v123, %v93
    %v134 = vmul.f32 %v126, %v94
    %v143 = vlaneseq
    %v144 = vand.u32 %v143, 127
    %v145 = vlaneseq
    %v146 = vshrl.u32 %v145, 7
    %v147 = vsub.s32 %v144, %v146
    %v148 = vrot.slane %v127, %v147
    %v149 = vlaneseq
    %v150 = vshrl.u32 %v149, 7
    %v151 = vsub.s32 %v144, %v150
    %v152 = vrot.slane %v128, %v151
    %v153 = vlaneseq
    %v154 = vshrl.u32 %v153, 7
    %v155 = vsub.s32 %v144, %v154
    %v156 = vrot.slane %v129, %v155
    %v157 = vlaneseq
    %v158 = vshrl.u32 %v157, 7
    %v159 = vsub.s32 %v144, %v158
    %v160 = vrot.slane %v130, %v159
    %v161 = vlaneseq
    %v162 = vshrl.u32 %v161, 7
    %v163 = vsub.s32 %v144, %v162
    %v164 = vrot.slane %v131, %v163
    %v165 = vlaneseq
    %v166 = vshrl.u32 %v165, 7
    %v167 = vsub.s32 %v144, %v166
    %v168 = vrot.slane %v132, %v167
    %v169 = vlaneseq
    %v170 = vshrl.u32 %v169, 7
    %v171 = vsub.s32 %v144, %v170
    %v172 = vrot.slane %v133, %v171
    %v173 = vlaneseq
    %v174 = vshrl.u32 %v173, 7
    %v175 = vsub.s32 %v144, %v174
    %v176 = vrot.slane %v134, %v175
    %vm177 = vcmask 1041409
    %v178 = vsel %vm177, %v152, %v148
    %vm179 = vcmask 1042434
    %v180 = vsel %vm179, %v156, %v178
    %vm181 = vcmask 1043459
    %v182 = vsel %vm181, %v160, %v180
    %vm183 = vcmask 1044484
    %v184 = vsel %vm183, %v164, %v182
    %vm185 = vcmask 1045509
    %v186 = vsel %vm185, %v168, %v184
    %vm187 = vcmask 1046534
    %v188 = vsel %vm187, %v172, %v186
    %vm189 = vcmask 1047559
    %v190 = vsel %vm189, %v176, %v188
    %vm192 = vcmask 64512
    %v193 = vsel %vm192, %v190, -inf
    %194 = vmax.xlane.f32.xlu0 %v193
    %v195 = vpop.xlane.xlu0 %194
    %v197 = vlaneseq
    %v198 = vshrl.u32 %v197, 7
    %v199 = vsub.s32 0, %v198
    %v200 = vrot.slane %v195, %v199
    %v201 = vlaneseq
    %v202 = vshrl.u32 %v201, 7
    %v203 = vsub.s32 1, %v202
    %v204 = vrot.slane %v195, %v203
    %v205 = vlaneseq
    %v206 = vshrl.u32 %v205, 7
    %v207 = vsub.s32 2, %v206
    %v208 = vrot.slane %v195, %v207
    %v209 = vlaneseq
    %v210 = vshrl.u32 %v209, 7
    %v211 = vsub.s32 3, %v210
    %v212 = vrot.slane %v195, %v211
    %v213 = vlaneseq
    %v214 = vshrl.u32 %v213, 7
    %v215 = vsub.s32 4, %v214
    %v216 = vrot.slane %v195, %v215
    %v217 = vlaneseq
    %v218 = vshrl.u32 %v217, 7
    %v219 = vsub.s32 5, %v218
    %v220 = vrot.slane %v195, %v219
    %v221 = vlaneseq
    %v222 = vshrl.u32 %v221, 7
    %v223 = vsub.s32 6, %v222
    %v224 = vrot.slane %v195, %v223
    %v225 = vlaneseq
    %v226 = vshrl.u32 %v225, 7
    %v227 = vsub.s32 7, %v226
    %v228 = vrot.slane %v195, %v227
    %v237 = vsub.f32 %v127, %v200
    %v238 = vsub.f32 %v128, %v204
    %v239 = vsub.f32 %v129, %v208
    %v240 = vsub.f32 %v130, %v212
    %v241 = vsub.f32 %v131, %v216
    %v242 = vsub.f32 %v132, %v220
    %v243 = vsub.f32 %v133, %v224
    %v244 = vsub.f32 %v134, %v228
    %v245 = vmul.f32 %v237, 1.442695
    %v246 = vpow.pop %v245
    %v247 = vmul.f32 %v238, 1.442695
    %v248 = vpow.pop %v247
    %v249 = vmul.f32 %v239, 1.442695
    %v250 = vpow.pop %v249
    %v251 = vmul.f32 %v240, 1.442695
    %v252 = vpow.pop %v251
    %v253 = vmul.f32 %v241, 1.442695
    %v254 = vpow.pop %v253
    %v255 = vmul.f32 %v242, 1.442695
    %v256 = vpow.pop %v255
    %v257 = vmul.f32 %v243, 1.442695
    %v258 = vpow.pop %v257
    %v259 = vmul.f32 %v244, 1.442695
    %v260 = vpow.pop %v259
    %269 = vset.pattern.permute.xlu0 0
    %270 = vperm.xlu0 %269, %v246
    %v271 = vpop.permute.xlu0 %270
    %272 = vset.pattern.permute.xlu0 0
    %273 = vperm.xlu0 %272, %v248
    %v274 = vpop.permute.xlu0 %273
    %275 = vset.pattern.permute.xlu0 0
    %276 = vperm.xlu0 %275, %v250
    %v277 = vpop.permute.xlu0 %276
    %278 = vset.pattern.permute.xlu0 0
    %279 = vperm.xlu0 %278, %v252
    %v280 = vpop.permute.xlu0 %279
    %281 = vset.pattern.permute.xlu0 0
    %282 = vperm.xlu0 %281, %v254
    %v283 = vpop.permute.xlu0 %282
    %284 = vset.pattern.permute.xlu0 0
    %285 = vperm.xlu0 %284, %v256
    %v286 = vpop.permute.xlu0 %285
    %287 = vset.pattern.permute.xlu0 0
    %288 = vperm.xlu0 %287, %v258
    %v289 = vpop.permute.xlu0 %288
    %290 = vset.pattern.permute.xlu0 0
    %291 = vperm.xlu0 %290, %v260
    %v292 = vpop.permute.xlu0 %291
    %v293 = vlaneseq
    %v294 = vshrl.u32 %v293, 7
    %v295 = vsub.s32 %v144, %v294
    %v296 = vrot.slane %v271, %v295
    %v297 = vlaneseq
    %v298 = vshrl.u32 %v297, 7
    %v299 = vsub.s32 %v144, %v298
    %v300 = vrot.slane %v274, %v299
    %v301 = vlaneseq
    %v302 = vshrl.u32 %v301, 7
    %v303 = vsub.s32 %v144, %v302
    %v304 = vrot.slane %v277, %v303
    %v305 = vlaneseq
    %v306 = vshrl.u32 %v305, 7
    %v307 = vsub.s32 %v144, %v306
    %v308 = vrot.slane %v280, %v307
    %v309 = vlaneseq
    %v310 = vshrl.u32 %v309, 7
    %v311 = vsub.s32 %v144, %v310
    %v312 = vrot.slane %v283, %v311
    %v313 = vlaneseq
    %v314 = vshrl.u32 %v313, 7
    %v315 = vsub.s32 %v144, %v314
    %v316 = vrot.slane %v286, %v315
    %v317 = vlaneseq
    %v318 = vshrl.u32 %v317, 7
    %v319 = vsub.s32 %v144, %v318
    %v320 = vrot.slane %v289, %v319
    %v321 = vlaneseq
    %v322 = vshrl.u32 %v321, 7
    %v323 = vsub.s32 %v144, %v322
    %v324 = vrot.slane %v292, %v323
    %v325 = vsel %vm177, %v300, %v296
    %v326 = vsel %vm179, %v304, %v325
    %v327 = vsel %vm181, %v308, %v326
    %v328 = vsel %vm183, %v312, %v327
    %v329 = vsel %vm185, %v316, %v328
    %v330 = vsel %vm187, %v320, %v329
    %v331 = vsel %vm189, %v324, %v330
    %v333 = vsel %vm192, %v331, 0.0
    %334 = vadd.xlane.f32.xlu0 %v333
    %v335 = vpop.xlane.xlu0 %334
    %v336 = vlog2.pop %v335
    %v337 = vmul.f32 %v336, 0.6931472
    %v338 = vadd.f32 %v337, %v195
    %vm339 = vcmask 7168
    %340 = vst.msk [vmem:[%s2] sm:$0xff] %vm339, %v338
    // Predicated region
    $region18: #{tpu_custom_call.1} parent=1 // pred_check
      _
    $region19: #{tpu_custom_call.1} parent=1 // pred_check_branch
      %342 = sbr.rel (0) target = $region21
    $region20: #{tpu_custom_call.1} parent=1 // pred_region
      _
    $region21: #{tpu_custom_call.1} parent=1 // pred_fallthru
      _
    // Predicated region
    $region22: #{tpu_custom_call.1} parent=1 // pred_check
      _
    $region23: #{tpu_custom_call.1} parent=1 // pred_check_branch
      %344 = sbr.rel (0) target = $region25
    $region24: #{tpu_custom_call.1} parent=1 // pred_region
      _
    $region25: #{tpu_custom_call.1} parent=1 // pred_fallthru
      _
    %345 = vsyncpa [#allocation3], 1
    %346 = vsyncpa [#allocation5], 1

</llo_original>
